<compile_context>
chip_gen: v6e
topology: v6e:2x2x1
jax: 0.10.0
libtpu: 0.0.40
codegen_flags: <defaults>
</compile_context>

<pallas_src>
import functools

import jax
import jax.numpy as jnp
from jax.experimental import pallas as pl
from jax.experimental.pallas import tpu as pltpu


def _round_up(v, m):
    return ((v + m - 1) // m) * m


# ----------------------------- Pallas kernel ------------------------------ #
def _fused_mlp_kernel(x_ref, w_ref, b_ref, o_ref, h_ref, *, act_names):
    """h_{l+1} = act_l(h_l @ W_l + b_l); all layers unrolled, all data in VMEM.

    x_ref: (B,  in_f)  f32   raw (unpadded) input activations
    w_ref: (L,  P, P)  bf16  stacked pre-transposed, zero-padded weights
    b_ref: (L,  1, P)  f32   stacked zero-padded biases
    o_ref: (B, out_f)  f32   real output (small masked store, negligible)
    h_ref: (Bp, P)     f32   VMEM scratch: lane-dense padded activation tile
    """
    B, in_f = x_ref.shape
    out_f = o_ref.shape[1]

    # Build the padded activation tile in VMEM: zero the whole tile, then drop
    # x into its top-left corner. Zero padding is safe even though padded
    # activation columns may become non-zero later (e.g. sigmoid(0)=0.5): the
    # next layer's padded *weight rows* are zero, so those columns contribute
    # exactly 0 to real outputs, and the final store keeps only real columns.
    h_ref[...] = jnp.zeros_like(h_ref)
    h_ref[:B, :in_f] = x_ref[...]

    h = h_ref[...]                                     # (Bp, P) f32
    for l, act in enumerate(act_names):                # static unroll over layers
        w = w_ref[l]                                   # (P, P) bf16
        b = b_ref[l]                                   # (1, P) f32
        # bf16 x bf16 on the MXU, f32 accumulation; elementwise math stays in
        # f32 (v5e has no bf16 VPU/EUP -- do not change).
        y = jnp.dot(h.astype(jnp.bfloat16), w,
                    preferred_element_type=jnp.float32) + b
        if act == "relu":
            y = jnp.maximum(y, 0.0)
        elif act == "tanh":
            y = jnp.tanh(y)
        elif act == "sigmoid":
            y = jax.nn.sigmoid(y)
        elif act == "identity":
            pass
        else:
            raise ValueError(f"unknown activation: {act}")
        # Dropout between layers is identity (eval mode / p == 0.0).
        # TODO(synk): training-mode dropout (p > 0) needs pltpu.prng_* masking.
        h = y

    o_ref[...] = h[:B, :out_f]                         # tiny masked store


# --------------------------- GeneralNN wrapper ----------------------------- #
class GeneralNNPallas:
    """MLP matching GeneralNN.forward (eval-mode dropout = identity)."""

    def __init__(self, sizes, act_names, dropOut=0.0, key=jax.random.PRNGKey(0)):
        assert len(act_names) == len(sizes) - 1
        self.sizes = list(sizes)
        self.act_names = tuple(act_names)
        self.dropOut = dropOut  # identity in eval mode / p == 0.0

        # --- PyTorch nn.Linear default init; keep f32 copies for reference ---
        self.params = []
        for s in range(len(sizes) - 1):
            in_f, out_f = sizes[s], sizes[s + 1]
            key, kw, kb = jax.random.split(key, 3)
            bound = 1.0 / (in_f ** 0.5)
            w = jax.random.uniform(kw, (out_f, in_f), jnp.float32, -bound, bound)
            b = jax.random.uniform(kb, (out_f,), jnp.float32, -bound, bound)
            self.params.append((w, b))

        # --- Kernel params: pre-transposed, zero-padded, stacked, built once ---
        L = len(self.params)
        # All layer sizes here share one 128-bucket, so a single padded width P
        # is exactly per-layer padding. TODO(synk): per-layer padded widths
        # (separate weight operands) for heterogeneous bucket sizes.
        P = max(128, max(_round_up(s, 128) for s in sizes))  # lane-dense width
        self.P = P

        # VMEM-residency guard (single resident (L, P, P) weight block).
        resident_bytes = L * P * P * 2 + L * P * 4
        assert resident_bytes <= (48 << 20), (
            "stacked weights too large for single-block VMEM residency; "
            "TODO(synk): grid=(L,) layer-streaming fallback")

        w_stack = jnp.zeros((L, P, P), jnp.bfloat16)
        b_stack = jnp.zeros((L, 1, P), jnp.float32)
        for l, (w, b) in enumerate(self.params):
            out_f, in_f = w.shape
            # Zero padding is safe: padded weight rows are 0, so any garbage in
            # padded activation columns contributes exactly 0 to the next layer.
            w_stack = w_stack.at[l, :in_f, :out_f].set(w.T.astype(jnp.bfloat16))
            b_stack = b_stack.at[l, 0, :out_f].set(b)
        self.w_stack = w_stack
        self.b_stack = b_stack

        # One dispatch per forward call (the pallas_call IS the whole forward).
        self._forward = jax.jit(self._forward_impl)

    # ---------------------------- fused forward ---------------------------- #
    def _forward_impl(self, x, w_stack, b_stack):
        B, in_f = x.shape
        P = self.P
        L = w_stack.shape[0]
        out_f = self.sizes[-1]
        Bp = _round_up(max(B, 8), 8)  # at least one sublane group

        # Explicit scoped-VMEM limit sized from the actual buffers (2x headroom
        # for any revolving copies), floored at 4 MiB and capped below v7x's
        # 64 MiB/TC physical VMEM.
        resident = (L * P * P * 2) + (L * P * 4) + (Bp * P * 4) \
            + (B * in_f * 4) + (B * out_f * 4)
        vmem_limit = int(min(60 << 20, max(2 * resident + (1 << 20), 4 << 20)))

        kernel = functools.partial(_fused_mlp_kernel, act_names=self.act_names)
        return pl.pallas_call(
            kernel,
            out_shape=jax.ShapeDtypeStruct((B, out_f), jnp.float32),
            # Single full-array block per operand; no grid (tiny workload,
            # dispatch/DMA-overhead bound -- do not tile).
            # TODO(synk): batch grid axis + dimension_semantics=("parallel",)
            # once B >= ~256 (dual-TC v7x throughput).
            in_specs=[
                pl.BlockSpec((B, in_f), lambda: (0, 0)),
                pl.BlockSpec((L, P, P), lambda: (0, 0, 0)),
                pl.BlockSpec((L, 1, P), lambda: (0, 0, 0)),
            ],
            out_specs=pl.BlockSpec((B, out_f), lambda: (0, 0)),
            scratch_shapes=[pltpu.VMEM((Bp, P), jnp.float32)],
            compiler_params=pltpu.CompilerParams(vmem_limit_bytes=vmem_limit),
        )(x, w_stack, b_stack)

    def __call__(self, x):
        return self._forward(x, self.w_stack, self.b_stack)

    # ---------------------------- pure-JAX ref ------------------------------ #
    def reference(self, x):
        """Pure-JAX reference with identical bf16-operand / f32-accumulate math."""
        acts = {
            "relu": lambda v: jnp.maximum(v, 0.0),
            "tanh": jnp.tanh,
            "sigmoid": jax.nn.sigmoid,
            "identity": lambda v: v,
        }
        for (w, b), act in zip(self.params, self.act_names):
            y = jnp.dot(x.astype(jnp.bfloat16), w.T.astype(jnp.bfloat16),
                        preferred_element_type=jnp.float32) + b
            x = acts[act](y)
        return x


# --------------------------------- main ------------------------------------ #
if __name__ == "__main__":
    key = jax.random.PRNGKey(0)
    kx, kp = jax.random.split(key)

    sizes = [32, 64, 128, 16]           # MLP layer sizes
    act_names = ["relu", "relu", "tanh"]
    batch = 8

    model = GeneralNNPallas(sizes, act_names, dropOut=0.0, key=kp)
    x = jax.random.normal(kx, (batch, sizes[0]), jnp.float32)

    out = jax.block_until_ready(model(x))
    ref = jax.block_until_ready(model.reference(x))

    assert out.shape == (batch, sizes[-1])
    assert jnp.allclose(out, ref, atol=1e-4, rtol=1e-4), "mismatch vs reference"

    print("KERNEL_OK")
</pallas_src>

<mosaic_0001>
module attributes {stable_mosaic.version = 11 : i64} {
  func.func @_fused_mlp_kernel(%arg0: memref<8x32xf32, #tpu.memory_space<vmem>>, %arg1: memref<3x128x128xbf16, #tpu.memory_space<vmem>>, %arg2: memref<3x1x128xf32, #tpu.memory_space<vmem>>, %arg3: memref<8x16xf32, #tpu.memory_space<vmem>>, %arg4: memref<8x128xf32, #tpu.memory_space<vmem>>) attributes {dimension_semantics = [], scalar_prefetch = 0 : i64, scratch_operands = 1 : i64, tpu.core_type = #tpu.core_type<tc>} {
    %cst = arith.constant 0.000000e+00 : f32
    %0 = vector.broadcast %cst : f32 to vector<8x128xf32>
    %c0 = arith.constant 0 : index
    %c0_0 = arith.constant 0 : index
    %1 = vector.load %arg4[%c0, %c0_0] : memref<8x128xf32, #tpu.memory_space<vmem>>, vector<8x128xf32>
    tpu.vector_store %arg4[%c0, %c0_0], %0 {strides = array<i32>} : memref<8x128xf32, #tpu.memory_space<vmem>>, vector<8x128xf32>,
    %c0_1 = arith.constant 0 : index
    %c0_2 = arith.constant 0 : index
    %2 = vector.load %arg0[%c0_1, %c0_2] : memref<8x32xf32, #tpu.memory_space<vmem>>, vector<8x32xf32>
    %c0_3 = arith.constant 0 : index
    %c0_4 = arith.constant 0 : index
    %3 = vector.load %arg4[%c0_3, %c0_4] : memref<8x128xf32, #tpu.memory_space<vmem>>, vector<8x32xf32>
    tpu.vector_store %arg4[%c0_3, %c0_4], %2 {strides = array<i32>} : memref<8x128xf32, #tpu.memory_space<vmem>>, vector<8x32xf32>,
    %c0_5 = arith.constant 0 : index
    %c0_6 = arith.constant 0 : index
    %4 = vector.load %arg4[%c0_5, %c0_6] : memref<8x128xf32, #tpu.memory_space<vmem>>, vector<8x128xf32>
    %c0_7 = arith.constant 0 : index
    %c0_8 = arith.constant 0 : index
    %c0_9 = arith.constant 0 : index
    %5 = vector.load %arg1[%c0_7, %c0_8, %c0_9] : memref<3x128x128xbf16, #tpu.memory_space<vmem>>, vector<1x128x128xbf16>
    %6 = vector.shape_cast %5 : vector<1x128x128xbf16> to vector<128x128xbf16>
    %c0_10 = arith.constant 0 : index
    %c0_11 = arith.constant 0 : index
    %c0_12 = arith.constant 0 : index
    %7 = vector.load %arg2[%c0_10, %c0_11, %c0_12] : memref<3x1x128xf32, #tpu.memory_space<vmem>>, vector<1x1x128xf32>
    %8 = vector.shape_cast %7 : vector<1x1x128xf32> to vector<1x128xf32>
    %9 = arith.truncf %4 : vector<8x128xf32> to vector<8x128xbf16>
    %cst_13 = arith.constant dense<0.000000e+00> : vector<8x128xf32>
    %10 = tpu.matmul %9, %6, %cst_13 {dimension_numbers = #tpu.dot_dimension_numbers<[1], [0], [0], [1], [0, 0, 1, 1], [], []>} : vector<8x128xbf16>, vector<128x128xbf16>, vector<8x128xf32> -> vector<8x128xf32>
    %11 = vector.broadcast %8 : vector<1x128xf32> to vector<8x128xf32>
    %12 = arith.addf %10, %11 : vector<8x128xf32>
    %cst_14 = arith.constant 0.000000e+00 : f32
    %13 = vector.broadcast %cst_14 : f32 to vector<8x128xf32>
    %14 = arith.maximumf %12, %13 : vector<8x128xf32>
    %c1 = arith.constant 1 : index
    %c0_15 = arith.constant 0 : index
    %c0_16 = arith.constant 0 : index
    %15 = vector.load %arg1[%c1, %c0_15, %c0_16] : memref<3x128x128xbf16, #tpu.memory_space<vmem>>, vector<1x128x128xbf16>
    %16 = vector.shape_cast %15 : vector<1x128x128xbf16> to vector<128x128xbf16>
    %c1_17 = arith.constant 1 : index
    %c0_18 = arith.constant 0 : index
    %c0_19 = arith.constant 0 : index
    %17 = vector.load %arg2[%c1_17, %c0_18, %c0_19] : memref<3x1x128xf32, #tpu.memory_space<vmem>>, vector<1x1x128xf32>
    %18 = vector.shape_cast %17 : vector<1x1x128xf32> to vector<1x128xf32>
    %19 = arith.truncf %14 : vector<8x128xf32> to vector<8x128xbf16>
    %cst_20 = arith.constant dense<0.000000e+00> : vector<8x128xf32>
    %20 = tpu.matmul %19, %16, %cst_20 {dimension_numbers = #tpu.dot_dimension_numbers<[1], [0], [0], [1], [0, 0, 1, 1], [], []>} : vector<8x128xbf16>, vector<128x128xbf16>, vector<8x128xf32> -> vector<8x128xf32>
    %21 = vector.broadcast %18 : vector<1x128xf32> to vector<8x128xf32>
    %22 = arith.addf %20, %21 : vector<8x128xf32>
    %cst_21 = arith.constant 0.000000e+00 : f32
    %23 = vector.broadcast %cst_21 : f32 to vector<8x128xf32>
    %24 = arith.maximumf %22, %23 : vector<8x128xf32>
    %c2 = arith.constant 2 : index
    %c0_22 = arith.constant 0 : index
    %c0_23 = arith.constant 0 : index
    %25 = vector.load %arg1[%c2, %c0_22, %c0_23] : memref<3x128x128xbf16, #tpu.memory_space<vmem>>, vector<1x128x128xbf16>
    %26 = vector.shape_cast %25 : vector<1x128x128xbf16> to vector<128x128xbf16>
    %c2_24 = arith.constant 2 : index
    %c0_25 = arith.constant 0 : index
    %c0_26 = arith.constant 0 : index
    %27 = vector.load %arg2[%c2_24, %c0_25, %c0_26] : memref<3x1x128xf32, #tpu.memory_space<vmem>>, vector<1x1x128xf32>
    %28 = vector.shape_cast %27 : vector<1x1x128xf32> to vector<1x128xf32>
    %29 = arith.truncf %24 : vector<8x128xf32> to vector<8x128xbf16>
    %cst_27 = arith.constant dense<0.000000e+00> : vector<8x128xf32>
    %30 = tpu.matmul %29, %26, %cst_27 {dimension_numbers = #tpu.dot_dimension_numbers<[1], [0], [0], [1], [0, 0, 1, 1], [], []>} : vector<8x128xbf16>, vector<128x128xbf16>, vector<8x128xf32> -> vector<8x128xf32>
    %31 = vector.broadcast %28 : vector<1x128xf32> to vector<8x128xf32>
    %32 = arith.addf %30, %31 : vector<8x128xf32>
    %33 = math.tanh %32 : vector<8x128xf32>
    %34 = vector.extract_strided_slice %33 {offsets = [0, 0], sizes = [8, 16], strides = [1, 1]} : vector<8x128xf32> to vector<8x16xf32>
    %c0_28 = arith.constant 0 : index
    %c0_29 = arith.constant 0 : index
    %35 = vector.load %arg3[%c0_28, %c0_29] : memref<8x16xf32, #tpu.memory_space<vmem>>, vector<8x16xf32>
    tpu.vector_store %arg3[%c0_28, %c0_29], %34 {strides = array<i32>} : memref<8x16xf32, #tpu.memory_space<vmem>>, vector<8x16xf32>,
    return
  }
}

</mosaic_0001>

<llo_original>
// kernel: _forward_impl.1
$region0: #{_forward_impl.1}
  #allocation0 [shape = 'u32[]', space=smem, size = 0x4, offset = 0x4, fixed_abs, tag = 'smem constant byte address 0x4 - core index']
  #allocation1 [shape = 'u32[144,128]{1,0:T(1,128)}', space=vmem, size = 0x12000, scoped, tag = 'internal scratch']
  #allocation2 [shape = 'f32[8,128]{1,0:T(8,128)}', space=vmem, size = 0x1000, scoped, tag = 'scratch operand']
  %s0 = inlined_call_operand.hbm [shape: f32[8,32], index: 0, kind: input, shape index: {}]
  %s1 = inlined_call_operand.hbm [shape: bf16[3,128,128], index: 1, kind: input, shape index: {}]
  %s2 = inlined_call_operand.vmem [shape: f32[3,1,128], index: 2, kind: input, shape index: {}]
  %s3 = inlined_call_operand.hbm [shape: f32[8,16], index: 3, kind: output, shape index: {}]
  %s4 = sld [smem:[#allocation0]]
  $region30: #{_forward_impl.1} parent=0
    _
  %s6 = ssub.s32 1, %s4
  %s7 = scalar_select 0, %s6, %s4
  $region1: #{_forward_impl.1} parent=0
    #allocation3 [shape = 'u8[4096]{0}', space=vmem, size = 0x1000, scoped, tag = 'input window, operand 0, single buffered']
    #allocation4 [shape = 's32[1]{0}', space=sflag, size = 0x4, scoped, tag = 'scoped memory for _forward_impl.1']
    #allocation5 [shape = 's32[1]{0}', space=sflag, size = 0x4, scoped, tag = 'scoped memory for _forward_impl.1']
    #allocation6 [shape = 'u8[98304]{0}', space=vmem, size = 0x18000, scoped, tag = 'input window, operand 1, single buffered']
    #allocation7 [shape = 's32[1]{0}', space=sflag, size = 0x4, scoped, tag = 'scoped memory for _forward_impl.1']
    #allocation8 [shape = 'u8[4096]{0}', space=vmem, size = 0x1000, scoped, tag = 'output window, operand 0, single buffered']
    %8 = vsyncpa [#allocation4], 0
    %9 = vsyncpa [#allocation7], 0
    %10 = vsyncpa [#allocation5], 0
    // Predicated region
    $region2: #{_forward_impl.1} parent=1 // pred_check
      _
    $region3: #{_forward_impl.1} parent=1 // pred_check_branch
      %12 = sbr.rel (0) target = $region5
    $region4: #{_forward_impl.1} parent=1 // pred_region
      %s14 = ssub.s32 128, 128
      %15 = vsyncadd [#allocation4], %s14
      %s17 = sshll.u32 [#allocation3], 4
      %s18 = int_to_ptr.vmem [resolvable:$true] %s17
      %20 = dma.hbm_to_vmem [thread:$0]  %s0, 128, %s18, [#allocation4]
    $region5: #{_forward_impl.1} parent=1 // pred_fallthru
      _
    // Predicated region
    $region6: #{_forward_impl.1} parent=1 // pred_check
      _
    $region7: #{_forward_impl.1} parent=1 // pred_check_branch
      %22 = sbr.rel (0) target = $region9
    $region8: #{_forward_impl.1} parent=1 // pred_region
      %s24 = ssub.s32 3072, 3072
      %25 = vsyncadd [#allocation7], %s24
      %s26 = sshll.u32 [#allocation6], 4
      %s27 = int_to_ptr.vmem [resolvable:$true] %s26
      %32 = dma.hbm_to_vmem [thread:$0]  %s1, 3072, %s27, [#allocation7], 64, 64, 4
    $region9: #{_forward_impl.1} parent=1 // pred_fallthru
      _
    // Predicated region
    $region10: #{_forward_impl.1} parent=1 // pred_check
      _
    $region11: #{_forward_impl.1} parent=1 // pred_check_branch
      %34 = sbr.rel (0) target = $region13
    $region12: #{_forward_impl.1} parent=1 // pred_region
      _
    $region13: #{_forward_impl.1} parent=1 // pred_fallthru
      _
    // Predicated region
    $region14: #{_forward_impl.1} parent=1 // pred_check
      _
    $region15: #{_forward_impl.1} parent=1 // pred_check_branch
      %36 = sbr.rel (0) target = $region17
    $region16: #{_forward_impl.1} parent=1 // pred_region
      %37 = dma.done [#allocation4], 128
    $region17: #{_forward_impl.1} parent=1 // pred_fallthru
      _
    // Predicated region
    $region18: #{_forward_impl.1} parent=1 // pred_check
      _
    $region19: #{_forward_impl.1} parent=1 // pred_check_branch
      %39 = sbr.rel (0) target = $region21
    $region20: #{_forward_impl.1} parent=1 // pred_region
      %40 = dma.done [#allocation7], 3072
    $region21: #{_forward_impl.1} parent=1 // pred_fallthru
      _
    %42 = vst [vmem:[#allocation2] sm:$0xff] 0.0
    %v43 = vld [vmem:[#allocation3] sm:$0xff]
    %vm44 = vcmask 261120
    %45 = vst.msk [vmem:[#allocation2] sm:$0xff] %vm44, %v43
    %v46 = vld [vmem:[#allocation2] sm:$0xff]
    %v47 = vld [vmem:[#allocation6] sm:$0xf]
    %v48 = vld [vmem:[#allocation6 + $0x4] sm:$0xf]
    %v49 = vld [vmem:[#allocation6 + $0x8] sm:$0xf]
    %v50 = vld [vmem:[#allocation6 + $0xc] sm:$0xf]
    %v51 = vld [vmem:[#allocation6 + $0x10] sm:$0xf]
    %v52 = vld [vmem:[#allocation6 + $0x14] sm:$0xf]
    %v53 = vld [vmem:[#allocation6 + $0x18] sm:$0xf]
    %v54 = vld [vmem:[#allocation6 + $0x1c] sm:$0xf]
    %v55 = vld [vmem:[#allocation6 + $0x20] sm:$0xf]
    %v56 = vld [vmem:[#allocation6 + $0x24] sm:$0xf]
    %v57 = vld [vmem:[#allocation6 + $0x28] sm:$0xf]
    %v58 = vld [vmem:[#allocation6 + $0x2c] sm:$0xf]
    %v59 = vld [vmem:[#allocation6 + $0x30] sm:$0xf]
    %v60 = vld [vmem:[#allocation6 + $0x34] sm:$0xf]
    %v61 = vld [vmem:[#allocation6 + $0x38] sm:$0xf]
    %v62 = vld [vmem:[#allocation6 + $0x3c] sm:$0xf]
    %v63 = vld [vmem:[%s2] sm:$0x1]
    %v64 = vpack.c.bf16 %v46, %v46
    %v66 = vlaneseq
    %v67 = vshrl.u32 %v66, 7
    %v68 = vsub.s32 0, %v67
    %v69 = vrot.slane %v63, %v68
    %v87 = vunpack.c.l.b16 %v47
    %v88 = vunpack.c.l.b16 %v48
    %v89 = vunpack.c.l.b16 %v49
    %v90 = vunpack.c.l.b16 %v50
    %v91 = vunpack.c.l.b16 %v51
    %v92 = vunpack.c.l.b16 %v52
    %v93 = vunpack.c.l.b16 %v53
    %v94 = vunpack.c.l.b16 %v54
    %v95 = vunpack.c.l.b16 %v55
    %v96 = vunpack.c.l.b16 %v56
    %v97 = vunpack.c.l.b16 %v57
    %v98 = vunpack.c.l.b16 %v58
    %v99 = vunpack.c.l.b16 %v59
    %v100 = vunpack.c.l.b16 %v60
    %v101 = vunpack.c.l.b16 %v61
    %v102 = vunpack.c.l.b16 %v62
    %v103 = vpack.c.b16 %v88, %v87
    %v104 = vpack.c.b16 %v90, %v89
    %v105 = vpack.c.b16 %v92, %v91
    %v106 = vpack.c.b16 %v94, %v93
    %v107 = vpack.c.b16 %v96, %v95
    %v108 = vpack.c.b16 %v98, %v97
    %v109 = vpack.c.b16 %v100, %v99
    %v110 = vpack.c.b16 %v102, %v101
    %119 = vmatprep.subr.bf16.mxu0 0
    %120 = vmatpush1.bf16.msra.mxu0 %v110
    %121 = vmatprep.subr.bf16.mxu0 0
    %122 = vmatpush1.bf16.msra.mxu0 %v109
    %123 = vmatprep.subr.bf16.mxu0 0
    %124 = vmatpush1.bf16.msra.mxu0 %v108
    %125 = vmatprep.subr.bf16.mxu0 0
    %126 = vmatpush1.bf16.msra.mxu0 %v107
    %127 = vmatprep.subr.bf16.mxu0 0
    %128 = vmatpush1.bf16.msra.mxu0 %v106
    %129 = vmatprep.subr.bf16.mxu0 0
    %130 = vmatpush1.bf16.msra.mxu0 %v105
    %131 = vmatprep.subr.bf16.mxu0 0
    %132 = vmatpush1.bf16.msra.mxu0 %v104
    %133 = vmatprep.subr.bf16.mxu0 0
    %134 = vmatpush1.bf16.msra.mxu0 %v103
    %135 = vmatprep.subr.bf16.mxu0 0
    %136 = vmatpush2.bf16.msra.mxu0 0
    %137 = vmatprep.subr.bf16.mxu0 0
    %138 = vmatpush2.bf16.msra.mxu0 0
    %139 = vmatprep.subr.bf16.mxu0 0
    %140 = vmatpush2.bf16.msra.mxu0 0
    %141 = vmatprep.subr.bf16.mxu0 0
    %142 = vmatpush2.bf16.msra.mxu0 0
    %143 = vmatprep.subr.bf16.mxu0 0
    %144 = vmatpush2.bf16.msra.mxu0 0
    %145 = vmatprep.subr.bf16.mxu0 0
    %146 = vmatpush2.bf16.msra.mxu0 0
    %147 = vmatprep.subr.bf16.mxu0 0
    %148 = vmatpush2.bf16.msra.mxu0 0
    %149 = vmatprep.subr.bf16.mxu0 0
    %150 = vmatpush2.bf16.msra.mxu0 0
    %151 = vmatprep.mubr.bf16.mxu0 0
    %152 = vmatmul.mubr.bf16.gmra.mxu0 %v64
    %v153 = vpop.f32.mrf.mxu0
    %v154 = vadd.f32 %v69, %v153
    %v155 = vpop.f32.mrf.mxu0
    %v156 = vpop.f32.mrf.mxu0
    %v157 = vpop.f32.mrf.mxu0
    %158 = vdwg.mxu0
    %v159 = vmax.f32 %v154, 0.0
    %s160 = scalar_lea.vmem [#allocation6], 64
    %v161 = vld [vmem:[%s160] sm:$0xf]
    %v162 = vld [vmem:[%s160 + $0x4] sm:$0xf]
    %v163 = vld [vmem:[%s160 + $0x8] sm:$0xf]
    %v164 = vld [vmem:[%s160 + $0xc] sm:$0xf]
    %v165 = vld [vmem:[%s160 + $0x10] sm:$0xf]
    %v166 = vld [vmem:[%s160 + $0x14] sm:$0xf]
    %v167 = vld [vmem:[%s160 + $0x18] sm:$0xf]
    %v168 = vld [vmem:[%s160 + $0x1c] sm:$0xf]
    %v169 = vld [vmem:[%s160 + $0x20] sm:$0xf]
    %v170 = vld [vmem:[%s160 + $0x24] sm:$0xf]
    %v171 = vld [vmem:[%s160 + $0x28] sm:$0xf]
    %v172 = vld [vmem:[%s160 + $0x2c] sm:$0xf]
    %v173 = vld [vmem:[%s160 + $0x30] sm:$0xf]
    %v174 = vld [vmem:[%s160 + $0x34] sm:$0xf]
    %v175 = vld [vmem:[%s160 + $0x38] sm:$0xf]
    %v176 = vld [vmem:[%s160 + $0x3c] sm:$0xf]
    %s177 = scalar_lea.vmem %s2, 1
    %v178 = vld [vmem:[%s177] sm:$0x1]
    %v179 = vpack.c.bf16 %v159, %v159
    %v181 = vlaneseq
    %v182 = vshrl.u32 %v181, 7
    %v183 = vsub.s32 0, %v182
    %v184 = vrot.slane %v178, %v183
    %v202 = vunpack.c.l.b16 %v161
    %v203 = vunpack.c.l.b16 %v162
    %v204 = vunpack.c.l.b16 %v163
    %v205 = vunpack.c.l.b16 %v164
    %v206 = vunpack.c.l.b16 %v165
    %v207 = vunpack.c.l.b16 %v166
    %v208 = vunpack.c.l.b16 %v167
    %v209 = vunpack.c.l.b16 %v168
    %v210 = vunpack.c.l.b16 %v169
    %v211 = vunpack.c.l.b16 %v170
    %v212 = vunpack.c.l.b16 %v171
    %v213 = vunpack.c.l.b16 %v172
    %v214 = vunpack.c.l.b16 %v173
    %v215 = vunpack.c.l.b16 %v174
    %v216 = vunpack.c.l.b16 %v175
    %v217 = vunpack.c.l.b16 %v176
    %v218 = vpack.c.b16 %v203, %v202
    %v219 = vpack.c.b16 %v205, %v204
    %v220 = vpack.c.b16 %v207, %v206
    %v221 = vpack.c.b16 %v209, %v208
    %v222 = vpack.c.b16 %v211, %v210
    %v223 = vpack.c.b16 %v213, %v212
    %v224 = vpack.c.b16 %v215, %v214
    %v225 = vpack.c.b16 %v217, %v216
    %234 = vmatprep.subr.bf16.mxu0 0
    %235 = vmatpush1.bf16.msra.mxu0 %v225
    %236 = vmatprep.subr.bf16.mxu0 0
    %237 = vmatpush1.bf16.msra.mxu0 %v224
    %238 = vmatprep.subr.bf16.mxu0 0
    %239 = vmatpush1.bf16.msra.mxu0 %v223
    %240 = vmatprep.subr.bf16.mxu0 0
    %241 = vmatpush1.bf16.msra.mxu0 %v222
    %242 = vmatprep.subr.bf16.mxu0 0
    %243 = vmatpush1.bf16.msra.mxu0 %v221
    %244 = vmatprep.subr.bf16.mxu0 0
    %245 = vmatpush1.bf16.msra.mxu0 %v220
    %246 = vmatprep.subr.bf16.mxu0 0
    %247 = vmatpush1.bf16.msra.mxu0 %v219
    %248 = vmatprep.subr.bf16.mxu0 0
    %249 = vmatpush1.bf16.msra.mxu0 %v218
    %250 = vmatprep.subr.bf16.mxu0 0
    %251 = vmatpush2.bf16.msra.mxu0 0
    %252 = vmatprep.subr.bf16.mxu0 0
    %253 = vmatpush2.bf16.msra.mxu0 0
    %254 = vmatprep.subr.bf16.mxu0 0
    %255 = vmatpush2.bf16.msra.mxu0 0
    %256 = vmatprep.subr.bf16.mxu0 0
    %257 = vmatpush2.bf16.msra.mxu0 0
    %258 = vmatprep.subr.bf16.mxu0 0
    %259 = vmatpush2.bf16.msra.mxu0 0
    %260 = vmatprep.subr.bf16.mxu0 0
    %261 = vmatpush2.bf16.msra.mxu0 0
    %262 = vmatprep.subr.bf16.mxu0 0
    %263 = vmatpush2.bf16.msra.mxu0 0
    %264 = vmatprep.subr.bf16.mxu0 0
    %265 = vmatpush2.bf16.msra.mxu0 0
    %266 = vmatprep.mubr.bf16.mxu0 0
    %267 = vmatmul.mubr.bf16.gmra.mxu0 %v179
    %v268 = vpop.f32.mrf.mxu0
    %v269 = vadd.f32 %v184, %v268
    %v270 = vpop.f32.mrf.mxu0
    %v271 = vpop.f32.mrf.mxu0
    %v272 = vpop.f32.mrf.mxu0
    %273 = vdwg.mxu0
    %v274 = vmax.f32 %v269, 0.0
    %s275 = scalar_lea.vmem [#allocation6], 128
    %v276 = vld [vmem:[%s275] sm:$0xf]
    %v277 = vld [vmem:[%s275 + $0x4] sm:$0xf]
    %v278 = vld [vmem:[%s275 + $0x8] sm:$0xf]
    %v279 = vld [vmem:[%s275 + $0xc] sm:$0xf]
    %v280 = vld [vmem:[%s275 + $0x10] sm:$0xf]
    %v281 = vld [vmem:[%s275 + $0x14] sm:$0xf]
    %v282 = vld [vmem:[%s275 + $0x18] sm:$0xf]
    %v283 = vld [vmem:[%s275 + $0x1c] sm:$0xf]
    %v284 = vld [vmem:[%s275 + $0x20] sm:$0xf]
    %v285 = vld [vmem:[%s275 + $0x24] sm:$0xf]
    %v286 = vld [vmem:[%s275 + $0x28] sm:$0xf]
    %v287 = vld [vmem:[%s275 + $0x2c] sm:$0xf]
    %v288 = vld [vmem:[%s275 + $0x30] sm:$0xf]
    %v289 = vld [vmem:[%s275 + $0x34] sm:$0xf]
    %v290 = vld [vmem:[%s275 + $0x38] sm:$0xf]
    %v291 = vld [vmem:[%s275 + $0x3c] sm:$0xf]
    %s292 = scalar_lea.vmem %s2, 2
    %v293 = vld [vmem:[%s292] sm:$0x1]
    %v294 = vpack.c.bf16 %v274, %v274
    %v296 = vlaneseq
    %v297 = vshrl.u32 %v296, 7
    %v298 = vsub.s32 0, %v297
    %v299 = vrot.slane %v293, %v298
    %v317 = vunpack.c.l.b16 %v276
    %v318 = vunpack.c.l.b16 %v277
    %v319 = vunpack.c.l.b16 %v278
    %v320 = vunpack.c.l.b16 %v279
    %v321 = vunpack.c.l.b16 %v280
    %v322 = vunpack.c.l.b16 %v281
    %v323 = vunpack.c.l.b16 %v282
    %v324 = vunpack.c.l.b16 %v283
    %v325 = vunpack.c.l.b16 %v284
    %v326 = vunpack.c.l.b16 %v285
    %v327 = vunpack.c.l.b16 %v286
    %v328 = vunpack.c.l.b16 %v287
    %v329 = vunpack.c.l.b16 %v288
    %v330 = vunpack.c.l.b16 %v289
    %v331 = vunpack.c.l.b16 %v290
    %v332 = vunpack.c.l.b16 %v291
    %v333 = vpack.c.b16 %v318, %v317
    %v334 = vpack.c.b16 %v320, %v319
    %v335 = vpack.c.b16 %v322, %v321
    %v336 = vpack.c.b16 %v324, %v323
    %v337 = vpack.c.b16 %v326, %v325
    %v338 = vpack.c.b16 %v328, %v327
    %v339 = vpack.c.b16 %v330, %v329
    %v340 = vpack.c.b16 %v332, %v331
    %349 = vmatprep.subr.bf16.mxu0 0
    %350 = vmatpush1.bf16.msra.mxu0 %v340
    %351 = vmatprep.subr.bf16.mxu0 0
    %352 = vmatpush1.bf16.msra.mxu0 %v339
    %353 = vmatprep.subr.bf16.mxu0 0
    %354 = vmatpush1.bf16.msra.mxu0 %v338
    %355 = vmatprep.subr.bf16.mxu0 0
    %356 = vmatpush1.bf16.msra.mxu0 %v337
    %357 = vmatprep.subr.bf16.mxu0 0
    %358 = vmatpush1.bf16.msra.mxu0 %v336
    %359 = vmatprep.subr.bf16.mxu0 0
    %360 = vmatpush1.bf16.msra.mxu0 %v335
    %361 = vmatprep.subr.bf16.mxu0 0
    %362 = vmatpush1.bf16.msra.mxu0 %v334
    %363 = vmatprep.subr.bf16.mxu0 0
    %364 = vmatpush1.bf16.msra.mxu0 %v333
    %365 = vmatprep.subr.bf16.mxu0 0
    %366 = vmatpush2.bf16.msra.mxu0 0
    %367 = vmatprep.subr.bf16.mxu0 0
    %368 = vmatpush2.bf16.msra.mxu0 0
    %369 = vmatprep.subr.bf16.mxu0 0
    %370 = vmatpush2.bf16.msra.mxu0 0
    %371 = vmatprep.subr.bf16.mxu0 0
    %372 = vmatpush2.bf16.msra.mxu0 0
    %373 = vmatprep.subr.bf16.mxu0 0
    %374 = vmatpush2.bf16.msra.mxu0 0
    %375 = vmatprep.subr.bf16.mxu0 0
    %376 = vmatpush2.bf16.msra.mxu0 0
    %377 = vmatprep.subr.bf16.mxu0 0
    %378 = vmatpush2.bf16.msra.mxu0 0
    %379 = vmatprep.subr.bf16.mxu0 0
    %380 = vmatpush2.bf16.msra.mxu0 0
    %381 = vmatprep.mubr.bf16.mxu0 0
    %382 = vmatmul.mubr.bf16.gmra.mxu0 %v294
    %v383 = vpop.f32.mrf.mxu0
    %v384 = vadd.f32 %v299, %v383
    %v385 = vpop.f32.mrf.mxu0
    %v386 = vpop.f32.mrf.mxu0
    %v387 = vpop.f32.mrf.mxu0
    %388 = vdwg.mxu0
    %v389 = vtanh.pop %v384
    %vm390 = vcmask 130048
    %391 = vst.msk [vmem:[#allocation8] sm:$0xff] %vm390, %v389
    // Predicated region
    $region22: #{_forward_impl.1} parent=1 // pred_check
      _
    $region23: #{_forward_impl.1} parent=1 // pred_check_branch
      %393 = sbr.rel (0) target = $region25
    $region24: #{_forward_impl.1} parent=1 // pred_region
      %s395 = ssub.s32 128, 128
      %396 = vsyncadd [#allocation5], %s395
      %s398 = sshll.u32 [#allocation8], 4
      %s399 = int_to_ptr.vmem [resolvable:$true] %s398
      %401 = dma.vmem_to_hbm [thread:$0]  %s399, 128, %s3, [#allocation5]
    $region25: #{_forward_impl.1} parent=1 // pred_fallthru
      _
    // Predicated region
    $region26: #{_forward_impl.1} parent=1 // pred_check
      _
    $region27: #{_forward_impl.1} parent=1 // pred_check_branch
      %403 = sbr.rel (0) target = $region29
    $region28: #{_forward_impl.1} parent=1 // pred_region
      %404 = dma.done [#allocation5], 128
    $region29: #{_forward_impl.1} parent=1 // pred_fallthru
      _
    %405 = vsyncpa [#allocation4], 1
    %406 = vsyncpa [#allocation7], 1
    %407 = vsyncpa [#allocation5], 1

</llo_original>
